<compile_context>
chip_gen: v7x
topology: tpu7x:2x2x1
jax: 0.10.0
libtpu: 0.0.40
codegen_flags: <defaults>
</compile_context>

<pallas_src>
import functools

import jax
import jax.numpy as jnp
from jax.experimental import pallas as pl
from jax.experimental.pallas import tpu as pltpu


def _distill_kl_kernel(ys_ref, yt_ref, out_ref, *,
                       inv_T, batch, tile_rows, needs_mask):
    i = pl.program_id(0)

    ys = ys_ref[...].astype(jnp.float32) * inv_T
    yt = yt_ref[...].astype(jnp.float32) * inv_T

    # Shift each row by its own max for numerically stable exps.
    ys_sh = ys - jnp.max(ys, axis=-1, keepdims=True)
    yt_sh = yt - jnp.max(yt, axis=-1, keepdims=True)

    exp_t = jnp.exp(yt_sh)
    z_t = jnp.sum(exp_t, axis=-1, keepdims=True)                 # (tb, 1)
    z_s = jnp.sum(jnp.exp(ys_sh), axis=-1, keepdims=True)        # (tb, 1)

    # KL(p_t || p_s) per row, algebraically folded:
    #   sum_c p_t*(log_p_t - log_p_s)
    #     = (1/z_t) * sum_c exp_t*(yt_sh - ys_sh) + log(z_s) - log(z_t)
    row_num = jnp.sum(exp_t * (yt_sh - ys_sh), axis=-1, keepdims=True)
    row_kl = row_num / z_t + jnp.log(z_s / z_t)                  # (tb, 1) f32

    if needs_mask:
        last = pl.num_programs(0) - 1

        @pl.when(i < last)
        def _():
            out_ref[...] = row_kl

        @pl.when(i == last)
        def _():
            # Select (NOT multiply) so NaN/Inf from uninitialized padded rows
            # of the partial last input block is discarded.
            row_idx = i * tile_rows + jax.lax.broadcasted_iota(
                jnp.int32, row_kl.shape, 0)
            out_ref[...] = jnp.where(row_idx < batch, row_kl, 0.0)
    else:
        out_ref[...] = row_kl


def _choose_batch_tile(B, C, itemsize):
    """Pick the batch-tile size and scoped-VMEM limit from the chip's VMEM."""
    try:
        vmem_cap = int(pltpu.get_tpu_info().vmem_capacity_bytes)
    except Exception:  # conservative fallback (assume v7x-sized VMEM)
        vmem_cap = 64 * 1024 * 1024
    if vmem_cap >= 100 * 1024 * 1024:      # v5e / v6e: 128 MiB VMEM
        budget = 24 * 1024 * 1024
        vmem_limit = 64 * 1024 * 1024
    else:                                  # v7x: 64 MiB VMEM (32 MiB scoped)
        budget = 10 * 1024 * 1024
        vmem_limit = 32 * 1024 * 1024
    # Per batch-row VMEM: 2 inputs x 2 pipeline buffers (input dtype) plus
    # roughly 4 tile-sized f32 compute temporaries after the in-kernel upcast.
    bytes_per_row = C * (4 * itemsize + 4 * 4)
    tb = budget // max(1, bytes_per_row)
    tb = int(max(1, min(tb, 2048, B)))
    sublane = {4: 8, 2: 16, 1: 32}.get(itemsize, 8)
    if tb >= sublane:
        tb = (tb // sublane) * sublane     # keep DMA / vreg packing dense
    return tb, vmem_limit


def distill_kl(y_s, y_t, T):
    """Pallas implementation of DistillKL.forward.

    y_s, y_t: [B, C] logits (f32 or bf16; bf16 halves HBM traffic and is cast
    to f32 inside the kernel)."""
    assert y_s.shape == y_t.shape and y_s.ndim == 2
    B, C = y_s.shape
    itemsize = max(jnp.dtype(y_s.dtype).itemsize, jnp.dtype(y_t.dtype).itemsize)
    tb, vmem_limit = _choose_batch_tile(B, C, itemsize)
    num_tiles = pl.cdiv(B, tb)

    kernel = functools.partial(
        _distill_kl_kernel,
        inv_T=1.0 / float(T),
        batch=B,
        tile_rows=tb,
        needs_mask=(B % tb) != 0,
    )
    row_kl = pl.pallas_call(
        kernel,
        out_shape=jax.ShapeDtypeStruct((num_tiles * tb, 1), jnp.float32),
        grid=(num_tiles,),
        in_specs=[
            pl.BlockSpec((tb, C), lambda i: (i, 0)),
            pl.BlockSpec((tb, C), lambda i: (i, 0)),
        ],
        # Each step owns a distinct per-row-KL block -> no revisiting, safe to
        # shard the batch axis across TensorCores on v7x.
        out_specs=pl.BlockSpec((tb, 1), lambda i: (i, 0)),
        compiler_params=pltpu.CompilerParams(
            dimension_semantics=("parallel",),
            vmem_limit_bytes=vmem_limit,
        ),
    )(y_s, y_t)
    # Tiny final reduction (B-ish floats) + the T**2 / B scaling in the wrapper.
    return jnp.sum(row_kl) * (float(T) * float(T) / float(B))


def _reference(y_s, y_t, T):
    # Pure-JAX reference for sanity checking.
    p_s = jax.nn.log_softmax(y_s.astype(jnp.float32) / T, axis=1)
    log_p_t = jax.nn.log_softmax(y_t.astype(jnp.float32) / T, axis=1)
    p_t = jnp.exp(log_p_t)
    return jnp.sum(p_t * (log_p_t - p_s)) * T * T / y_s.shape[0]


if __name__ == "__main__":
    T = 4.0
    keys = jax.random.split(jax.random.PRNGKey(0), 4)

    # Small demo shapes consistent with the module (2-D logits): batch=8, classes=32.
    y_s = jax.random.normal(keys[0], (8, 32), dtype=jnp.float32)
    y_t = jax.random.normal(keys[1], (8, 32), dtype=jnp.float32)
    loss = distill_kl(y_s, y_t, T)
    jax.block_until_ready(loss)
    ref = _reference(y_s, y_t, T)
    assert jnp.allclose(loss, ref, atol=1e-5, rtol=1e-5), (loss, ref)

    # Multi-step grid with a masked partial last tile (B=20 -> tile 16, 2 steps).
    y_s2 = jax.random.normal(keys[2], (20, 32), dtype=jnp.float32)
    y_t2 = jax.random.normal(keys[3], (20, 32), dtype=jnp.float32)
    loss2 = distill_kl(y_s2, y_t2, T)
    jax.block_until_ready(loss2)
    ref2 = _reference(y_s2, y_t2, T)
    assert jnp.allclose(loss2, ref2, atol=1e-5, rtol=1e-5), (loss2, ref2)

    # bf16-at-boundary path (halves HBM traffic; upcast to f32 inside kernel).
    y_s3 = y_s2.astype(jnp.bfloat16)
    y_t3 = y_t2.astype(jnp.bfloat16)
    loss3 = distill_kl(y_s3, y_t3, T)
    jax.block_until_ready(loss3)
    ref3 = _reference(y_s3, y_t3, T)
    assert jnp.allclose(loss3, ref3, atol=1e-3, rtol=1e-3), (loss3, ref3)

    print("KERNEL_OK")
</pallas_src>

<mosaic_0001>
module attributes {stable_mosaic.version = 11 : i64} {
  func.func @_distill_kl_kernel(%arg0: i32, %arg1: memref<8x32xf32, #tpu.memory_space<vmem>>, %arg2: memref<8x32xf32, #tpu.memory_space<vmem>>, %arg3: memref<8x1xf32, #tpu.memory_space<vmem>>) attributes {dimension_semantics = [#tpu.dimension_semantics<parallel>], iteration_bounds = array<i64: 1>, scalar_prefetch = 0 : i64, scratch_operands = 0 : i64, tpu.core_type = #tpu.core_type<tc>, window_params = [{transform_indices = @transform_0, window_bounds = array<i64: 8, 32>}, {transform_indices = @transform_1, window_bounds = array<i64: 8, 32>}, {transform_indices = @transform_2, window_bounds = array<i64: 8, 1>}]} {
    %c0 = arith.constant 0 : index
    %c0_0 = arith.constant 0 : index
    %0 = vector.load %arg1[%c0, %c0_0] : memref<8x32xf32, #tpu.memory_space<vmem>>, vector<8x32xf32>
    %cst = arith.constant 2.500000e-01 : f32
    %1 = vector.broadcast %cst : f32 to vector<8x32xf32>
    %2 = arith.mulf %0, %1 : vector<8x32xf32>
    %c0_1 = arith.constant 0 : index
    %c0_2 = arith.constant 0 : index
    %3 = vector.load %arg2[%c0_1, %c0_2] : memref<8x32xf32, #tpu.memory_space<vmem>>, vector<8x32xf32>
    %cst_3 = arith.constant 2.500000e-01 : f32
    %4 = vector.broadcast %cst_3 : f32 to vector<8x32xf32>
    %5 = arith.mulf %3, %4 : vector<8x32xf32>
    %cst_4 = arith.constant dense<0xFF800000> : vector<8xf32>
    %6 = vector.multi_reduction <maximumf>, %2, %cst_4 [1] : vector<8x32xf32> to vector<8xf32>
    %7 = vector.shape_cast %6 : vector<8xf32> to vector<8x1xf32>
    %8 = vector.broadcast %7 : vector<8x1xf32> to vector<8x32xf32>
    %9 = arith.subf %2, %8 : vector<8x32xf32>
    %cst_5 = arith.constant dense<0xFF800000> : vector<8xf32>
    %10 = vector.multi_reduction <maximumf>, %5, %cst_5 [1] : vector<8x32xf32> to vector<8xf32>
    %11 = vector.shape_cast %10 : vector<8xf32> to vector<8x1xf32>
    %12 = vector.broadcast %11 : vector<8x1xf32> to vector<8x32xf32>
    %13 = arith.subf %5, %12 : vector<8x32xf32>
    %14 = math.exp %13 : vector<8x32xf32>
    %cst_6 = arith.constant dense<0.000000e+00> : vector<8xf32>
    %15 = vector.multi_reduction <add>, %14, %cst_6 [1] : vector<8x32xf32> to vector<8xf32>
    %16 = vector.shape_cast %15 : vector<8xf32> to vector<8x1xf32>
    %17 = math.exp %9 : vector<8x32xf32>
    %cst_7 = arith.constant dense<0.000000e+00> : vector<8xf32>
    %18 = vector.multi_reduction <add>, %17, %cst_7 [1] : vector<8x32xf32> to vector<8xf32>
    %19 = vector.shape_cast %18 : vector<8xf32> to vector<8x1xf32>
    %20 = arith.subf %13, %9 : vector<8x32xf32>
    %21 = arith.mulf %14, %20 : vector<8x32xf32>
    %cst_8 = arith.constant dense<0.000000e+00> : vector<8xf32>
    %22 = vector.multi_reduction <add>, %21, %cst_8 [1] : vector<8x32xf32> to vector<8xf32>
    %23 = vector.shape_cast %22 : vector<8xf32> to vector<8x1xf32>
    %24 = arith.divf %23, %16 : vector<8x1xf32>
    %25 = arith.divf %19, %16 : vector<8x1xf32>
    %26 = math.log %25 : vector<8x1xf32>
    %27 = arith.addf %24, %26 : vector<8x1xf32>
    %c0_9 = arith.constant 0 : index
    %c0_10 = arith.constant 0 : index
    %28 = vector.load %arg3[%c0_9, %c0_10] : memref<8x1xf32, #tpu.memory_space<vmem>>, vector<8x1xf32>
    tpu.vector_store %arg3[%c0_9, %c0_10], %27 {strides = array<i32>} : memref<8x1xf32, #tpu.memory_space<vmem>>, vector<8x1xf32>,
    return
  }
  func.func @transform_0(%arg0: i32) -> (i32, i32) {
    %c0_i32 = arith.constant 0 : i32
    %c0_i32_0 = arith.constant 0 : i32
    return %arg0, %c0_i32 : i32, i32
  }
  func.func @transform_1(%arg0: i32) -> (i32, i32) {
    %c0_i32 = arith.constant 0 : i32
    %c0_i32_0 = arith.constant 0 : i32
    return %arg0, %c0_i32 : i32, i32
  }
  func.func @transform_2(%arg0: i32) -> (i32, i32) {
    %c0_i32 = arith.constant 0 : i32
    %c0_i32_0 = arith.constant 0 : i32
    return %arg0, %c0_i32 : i32, i32
  }
}

</mosaic_0001>

<llo_original>
// kernel: tpu_custom_call.1
$region0: #{tpu_custom_call.1}
  #allocation0 [shape = 'u32[]', space=smem, size = 0x4, offset = 0x4, fixed_abs, tag = 'smem constant byte address 0x4 - core index']
  #allocation1 [shape = 'u32[144,128]{1,0:T(1,128)}', space=vmem, size = 0x12000, scoped, tag = 'internal scratch']
  %s0 = inlined_call_operand.hbm [shape: f32[8,32], index: 0, kind: input, shape index: {}]
  %s1 = inlined_call_operand.hbm [shape: f32[8,32], index: 1, kind: input, shape index: {}]
  %s2 = inlined_call_operand.vmem [shape: f32[8,1], index: 2, kind: output, shape index: {}]
  %s3 = sld [smem:[#allocation0]]
  $region26: #{tpu_custom_call.1} parent=0
    _
  %s5 = ssub.s32 1, %s3
  %s6 = scalar_select 0, %s5, %s3
  $region1: #{tpu_custom_call.1} parent=0
    #allocation2 [shape = 'u8[4096]{0}', space=vmem, size = 0x1000, scoped, tag = 'input window, operand 0, single buffered']
    #allocation3 [shape = 's32[1]{0}', space=sflag, size = 0x4, scoped, tag = 'scoped memory for tpu_custom_call.1']
    #allocation4 [shape = 'u8[4096]{0}', space=vmem, size = 0x1000, scoped, tag = 'input window, operand 1, single buffered']
    #allocation5 [shape = 's32[1]{0}', space=sflag, size = 0x4, scoped, tag = 'scoped memory for tpu_custom_call.1']
    %7 = vsyncpa [#allocation3], 0
    %8 = vsyncpa [#allocation5], 0
    // Predicated region
    $region2: #{tpu_custom_call.1} parent=1 // pred_check
      _
    $region3: #{tpu_custom_call.1} parent=1 // pred_check_branch
      %10 = sbr.rel (0) target = $region5
    $region4: #{tpu_custom_call.1} parent=1 // pred_region
      %s12 = ssub.s32 128, 128
      %13 = vsyncadd [#allocation3], %s12
      %s15 = sshll.u32 [#allocation2], 4
      %s16 = int_to_ptr.vmem [resolvable:$true] %s15
      %18 = dma.hbm_to_vmem [thread:$0]  %s0, 128, %s16, [#allocation3]
    $region5: #{tpu_custom_call.1} parent=1 // pred_fallthru
      _
    // Predicated region
    $region6: #{tpu_custom_call.1} parent=1 // pred_check
      _
    $region7: #{tpu_custom_call.1} parent=1 // pred_check_branch
      %20 = sbr.rel (0) target = $region9
    $region8: #{tpu_custom_call.1} parent=1 // pred_region
      %s22 = ssub.s32 128, 128
      %23 = vsyncadd [#allocation5], %s22
      %s25 = sshll.u32 [#allocation4], 4
      %s26 = int_to_ptr.vmem [resolvable:$true] %s25
      %28 = dma.hbm_to_vmem [thread:$0]  %s1, 128, %s26, [#allocation5]
    $region9: #{tpu_custom_call.1} parent=1 // pred_fallthru
      _
    // Predicated region
    $region10: #{tpu_custom_call.1} parent=1 // pred_check
      _
    $region11: #{tpu_custom_call.1} parent=1 // pred_check_branch
      %30 = sbr.rel (0) target = $region13
    $region12: #{tpu_custom_call.1} parent=1 // pred_region
      %31 = dma.done [#allocation3], 128
    $region13: #{tpu_custom_call.1} parent=1 // pred_fallthru
      _
    // Predicated region
    $region14: #{tpu_custom_call.1} parent=1 // pred_check
      _
    $region15: #{tpu_custom_call.1} parent=1 // pred_check_branch
      %33 = sbr.rel (0) target = $region17
    $region16: #{tpu_custom_call.1} parent=1 // pred_region
      %34 = dma.done [#allocation5], 128
    $region17: #{tpu_custom_call.1} parent=1 // pred_fallthru
      _
    %v35 = vld [vmem:[#allocation2] sm:$0xff]
    %v36 = vmul.f32 %v35, 0.25
    %v37 = vld [vmem:[#allocation4] sm:$0xff]
    %v38 = vmul.f32 %v37, 0.25
    %vm39 = vcmask 261120
    %v40 = vsel %vm39, %v36, -inf
    %41 = vmax.xlane.f32.xlu0 %v40
    %v42 = vpop.xlane.xlu0 %41
    %v43 = vsub.f32 %v36, %v42
    %v44 = vsel %vm39, %v38, -inf
    %45 = vmax.xlane.f32.xlu0 %v44
    %v46 = vpop.xlane.xlu0 %45
    %v47 = vsub.f32 %v38, %v46
    %v48 = vmul.f32 %v47, 1.442695
    %v49 = vpow.pop %v48
    %v50 = vsel %vm39, %v49, 0.0
    %51 = vadd.xlane.f32.xlu0 %v50
    %v52 = vpop.xlane.xlu0 %51
    %v53 = vmul.f32 %v43, 1.442695
    %v54 = vpow.pop %v53
    %v55 = vsel %vm39, %v54, 0.0
    %56 = vadd.xlane.f32.xlu0 %v55
    %v57 = vpop.xlane.xlu0 %56
    %v58 = vsub.f32 %v47, %v43
    %v59 = vmul.f32 %v49, %v58
    %v60 = vsel %vm39, %v59, 0.0
    %61 = vadd.xlane.f32.xlu0 %v60
    %v62 = vpop.xlane.xlu0 %61
    %v63 = vrcp.pop %v52
    %v64 = vmul.f32 %v62, %v63
    %v65 = vmul.f32 %v57, %v63
    %v66 = vlog2.pop %v65
    %v67 = vmul.f32 %v66, 0.6931472
    %v68 = vadd.f32 %v64, %v67
    %vm69 = vcmask 7168
    %70 = vst.msk [vmem:[%s2] sm:$0xff] %vm69, %v68
    // Predicated region
    $region18: #{tpu_custom_call.1} parent=1 // pred_check
      _
    $region19: #{tpu_custom_call.1} parent=1 // pred_check_branch
      %72 = sbr.rel (0) target = $region21
    $region20: #{tpu_custom_call.1} parent=1 // pred_region
      _
    $region21: #{tpu_custom_call.1} parent=1 // pred_fallthru
      _
    // Predicated region
    $region22: #{tpu_custom_call.1} parent=1 // pred_check
      _
    $region23: #{tpu_custom_call.1} parent=1 // pred_check_branch
      %74 = sbr.rel (0) target = $region25
    $region24: #{tpu_custom_call.1} parent=1 // pred_region
      _
    $region25: #{tpu_custom_call.1} parent=1 // pred_fallthru
      _
    %75 = vsyncpa [#allocation3], 1
    %76 = vsyncpa [#allocation5], 1

</llo_original>
